<compile_context>
chip_gen: v5e
topology: v5e:2x2
jax: 0.10.0
libtpu: 0.0.40
codegen_flags: <defaults>
</compile_context>

<pallas_src>
import numpy as np

import jax
import jax.numpy as jnp
from jax.experimental import pallas as pl
from jax.experimental.pallas import tpu as pltpu


# ----------------------------------------------------------------------------
# Kernels
# ----------------------------------------------------------------------------
def _irfft2_fused_kernel(x_ref, w_ref, o_ref):
    """x: (P, 2*h*wf) flattened [real | imag] spectra.  w: (2*h*wf, h*w) fused
    inverse-rDFT matrix (scale / Hermitian doubling / norm / 4 folded in).
    o: (P, h*w) flattened images."""
    o_ref[...] = jnp.dot(x_ref[...], w_ref[...],
                         preferred_element_type=jnp.float32)


def _irfft2_sep_kernel(x_ref, scale_ref, m1_ref, acos_ref, asin_ref, o_ref):
    """x: (P, h, 2*wf) rows = [xr_row | xi_row].  scale: (h, 2*wf).
    m1: (2*wf, 2*w) fused [[C,S],[-S,C]] kx inverse-DFT (norm folded).
    acos/asin: (h, h) ky inverse-DFT.  o: (P, h, w)."""
    P, h, _ = x_ref.shape
    w = o_ref.shape[-1]
    dot = lambda a, b: jnp.dot(a, b, preferred_element_type=jnp.float32)

    # Fused elementwise scaling, planes flattened onto sublanes so the kx
    # contraction is a single big MXU matmul with K = 2*wf, N = 2*w.
    xs = (x_ref[...] * scale_ref[...][None, :, :]).reshape(P * h, -1)
    pq = dot(xs, m1_ref[...])                        # (P*h, 2*w): [p1 | p2]

    cA = acos_ref[...]
    sA = asin_ref[...]
    for p in range(P):                               # static unroll, P small
        blk = pq[p * h:(p + 1) * h, :]
        o_ref[p, :, :] = dot(cA, blk[:, :w]) - dot(sA, blk[:, w:])


# ----------------------------------------------------------------------------
# Trace-time constants (mirror of IrfftToImg.__init__)
# ----------------------------------------------------------------------------
def _rfft2d_freqs(h, w):
    fy = np.fft.fftfreq(h)[:, None]
    if w % 2 == 1:
        fx = np.fft.fftfreq(w)[:w // 2 + 2]
    else:
        fx = np.fft.fftfreq(w)[:w // 2 + 1]
    return np.sqrt(fx * fx + fy * fy)


def _spectrum_scale(h, w, decay_power):
    freqs = _rfft2d_freqs(h, w)
    scale = 1.0 / np.maximum(freqs, 1.0 / max(h, w)) ** decay_power
    return scale * np.sqrt(w * h)                    # (h, wf) float64


# ----------------------------------------------------------------------------
# Block sizing / VMEM budgeting
# ----------------------------------------------------------------------------
def _vmem_limit(est_bytes):
    # Raise the scoped-VMEM limit above the per-step working set (v5e default
    # is only 16 MiB) while staying safely below v7x's 64 MiB physical VMEM.
    return int(min(max(2 * est_bytes, 32 << 20), 48 << 20))


def _choose_planes_fused(B, k_dim, n_dim, budget_bytes=20 << 20):
    # Input/output blocks are double-buffered; W is resident (counted in the
    # vmem_limit estimate, not per plane).  P must be a multiple of 8 or == B
    # (sublane constraint on the 2-D block's second-to-last dim).
    per_plane = 4 * 2 * (k_dim + n_dim)
    cap = max(1, budget_bytes // max(per_plane, 1))
    cands = sorted({B} | {d for d in range(8, B + 1, 8) if B % d == 0})
    feas = [c for c in cands if c <= cap]
    if not feas:
        return min(cands)
    multi = [c for c in feas if B // c >= 2]         # prefer grid >= 2 (v7x 2 TCs)
    return max(multi) if multi else max(feas)


def _largest_divisor_le(n, limit):
    limit = max(1, min(n, limit))
    for d in range(limit, 0, -1):
        if n % d == 0:
            return d
    return 1


def _choose_planes_sep(B, h, w, wf, budget_bytes=20 << 20):
    # 2 buffers each for input/output blocks + the pq intermediate, per plane.
    per_plane = 4 * (2 * h * 2 * wf + 2 * h * w + h * 2 * w)
    cap = max(1, budget_bytes // max(per_plane, 1))
    if B >= 2:
        return _largest_divisor_le(B, min(cap, B // 2))   # keep grid >= 2
    return 1


# ----------------------------------------------------------------------------
# Builder: returns a jitted forward fn  spectrum_vars (b,2,ch,h,wf) -> (b,ch,h,w)
# ----------------------------------------------------------------------------
def build_irfft_to_img(shape, decay_power, mode="auto",
                       fused_matrix_limit_bytes=12 << 20):
    _, ch, h, w = shape
    # TODO(synk): odd image widths (the w//2+2 rfft-freq branch) are not
    # supported by this DFT-as-matmul formulation; the module is used with even w.
    assert w % 2 == 0, "even image width required"
    wf = w // 2 + 1

    scale = _spectrum_scale(h, w, decay_power)        # (h, wf)
    alpha = np.full((wf,), 2.0)                       # Hermitian doubling
    alpha[0] = 1.0
    alpha[-1] = 1.0
    norm = 1.0 / (h * w) / 4.0                        # irfft2 backward norm + /4

    if mode == "auto":
        w_bytes = 4 * (2 * h * wf) * (h * w)
        mode = "fused" if w_bytes <= fused_matrix_limit_bytes else "separable"

    if mode == "fused":
        # Fully fused real inverse-DFT matrix: img_flat = [Xr_flat|Xi_flat] @ W
        ky = np.arange(h, dtype=np.float64).reshape(h, 1, 1, 1)
        kx = np.arange(wf, dtype=np.float64).reshape(1, wf, 1, 1)
        yy = np.arange(h, dtype=np.float64).reshape(1, 1, h, 1)
        xx = np.arange(w, dtype=np.float64).reshape(1, 1, 1, w)
        theta = 2.0 * np.pi * (yy * ky / h + xx * kx / w)       # (h, wf, h, w)
        coef = (scale * alpha[None, :])[:, :, None, None] * norm
        wr = (coef * np.cos(theta)).reshape(h * wf, h * w)
        wi = (-coef * np.sin(theta)).reshape(h * wf, h * w)
        w_mat = jnp.asarray(np.concatenate([wr, wi], axis=0), dtype=jnp.float32)

        k_dim, n_dim = 2 * h * wf, h * w

        def fwd(spectrum_vars):
            batch = spectrum_vars.shape[0]
            sv = spectrum_vars[:, :, :ch, :h, :].astype(jnp.float32)
            # (b,2,ch,h,wf) -> (b,ch,2,h,wf) -> (b*ch, 2*h*wf): per plane the
            # lane vector is [Xr.flatten() | Xi.flatten()].
            x = jnp.transpose(sv, (0, 2, 1, 3, 4)).reshape(batch * ch, k_dim)
            B = batch * ch
            P = _choose_planes_fused(B, k_dim, n_dim)
            grid = (B // P,)
            est = 4 * (2 * P * k_dim + 2 * P * n_dim + 2 * k_dim * n_dim)
            out = pl.pallas_call(
                _irfft2_fused_kernel,
                out_shape=jax.ShapeDtypeStruct((B, n_dim), jnp.float32),
                grid=grid,
                in_specs=[
                    pl.BlockSpec((P, k_dim), lambda i: (i, 0)),       # spectra
                    pl.BlockSpec((k_dim, n_dim), lambda i: (0, 0)),   # W (resident)
                ],
                out_specs=pl.BlockSpec((P, n_dim), lambda i: (i, 0)),
                compiler_params=pltpu.CompilerParams(
                    dimension_semantics=("parallel",),
                    vmem_limit_bytes=_vmem_limit(est)),
                cost_estimate=pl.CostEstimate(
                    flops=2 * B * k_dim * n_dim,
                    transcendentals=0,
                    bytes_accessed=4 * (B * k_dim + B * n_dim + k_dim * n_dim)),
            )(x, w_mat)
            return out.reshape(batch, ch, h, w)

        return jax.jit(fwd)

    # ---------------- separable path (large images) ----------------
    x_idx = np.arange(w, dtype=np.float64)[None, :]
    kx = np.arange(wf, dtype=np.float64)[:, None]
    ang_w = 2.0 * np.pi * kx * x_idx / w
    cmat = alpha[:, None] * np.cos(ang_w) * norm                  # (wf, w)
    smat = alpha[:, None] * np.sin(ang_w) * norm
    m1 = np.zeros((2 * wf, 2 * w))
    m1[:wf, :w] = cmat
    m1[:wf, w:] = smat
    m1[wf:, :w] = -smat
    m1[wf:, w:] = cmat

    y_idx = np.arange(h, dtype=np.float64)[:, None]
    ky = np.arange(h, dtype=np.float64)[None, :]
    ang_h = 2.0 * np.pi * y_idx * ky / h
    acos = np.cos(ang_h)
    asin = np.sin(ang_h)

    m1_j = jnp.asarray(m1, jnp.float32)
    acos_j = jnp.asarray(acos, jnp.float32)
    asin_j = jnp.asarray(asin, jnp.float32)
    scale2_j = jnp.asarray(np.concatenate([scale, scale], axis=1), jnp.float32)

    def fwd(spectrum_vars):
        batch = spectrum_vars.shape[0]
        sv = spectrum_vars[:, :, :ch, :h, :].astype(jnp.float32)
        # (b,2,ch,h,wf) -> (b,ch,h,2,wf) -> (b*ch, h, 2*wf): each row is
        # [xr_row | xi_row], pairing with the fused [[C,S],[-S,C]] matrix.
        x = jnp.transpose(sv, (0, 2, 3, 1, 4)).reshape(batch * ch, h, 2 * wf)
        B = batch * ch
        P = _choose_planes_sep(B, h, w, wf)
        grid = (B // P,)
        est = 4 * (2 * P * h * 2 * wf + 2 * P * h * w + P * h * 2 * w
                   + 2 * (2 * wf * 2 * w + h * 2 * wf + 2 * h * h))
        out = pl.pallas_call(
            _irfft2_sep_kernel,
            out_shape=jax.ShapeDtypeStruct((B, h, w), jnp.float32),
            grid=grid,
            in_specs=[
                pl.BlockSpec((P, h, 2 * wf), lambda i: (i, 0, 0)),    # spectra
                pl.BlockSpec((h, 2 * wf), lambda i: (0, 0)),          # scale
                pl.BlockSpec((2 * wf, 2 * w), lambda i: (0, 0)),      # [[C,S],[-S,C]]
                pl.BlockSpec((h, h), lambda i: (0, 0)),               # acos
                pl.BlockSpec((h, h), lambda i: (0, 0)),               # asin
            ],
            out_specs=pl.BlockSpec((P, h, w), lambda i: (i, 0, 0)),
            compiler_params=pltpu.CompilerParams(
                dimension_semantics=("parallel",),
                vmem_limit_bytes=_vmem_limit(est)),
            cost_estimate=pl.CostEstimate(
                flops=2 * B * (h * 2 * wf * 2 * w + 2 * h * h * w),
                transcendentals=0,
                bytes_accessed=4 * (B * h * 2 * wf + B * h * w)),
        )(x, scale2_j, m1_j, acos_j, asin_j)
        return out.reshape(batch, ch, h, w)

    return jax.jit(fwd)


# ----------------------------------------------------------------------------
if __name__ == "__main__":
    batch, ch, h, w = 2, 4, 16, 16
    decay_power, sd = 1.0, 0.01
    wf = w // 2 + 1

    key = jax.random.PRNGKey(0)
    spectrum_vars = sd * jax.random.normal(key, (batch, 2, ch, h, wf), jnp.float32)

    # Reference: same math via jnp.fft (matches torch.fft.irfft2 semantics).
    scale_ref = jnp.asarray(_spectrum_scale(h, w, decay_power), jnp.float32)
    spec = spectrum_vars[:, 0] + 1j * spectrum_vars[:, 1]
    ref = jnp.fft.irfft2(spec * scale_ref[None, None], axes=(-2, -1))[:, :, :h, :w] / 4.0
    ref_np = np.asarray(ref)

    # Exercise both paths (fused is the auto-selected one at this size).
    for mode in ("fused", "separable"):
        fwd = build_irfft_to_img((batch, ch, h, w), decay_power, mode=mode)
        imgs = jax.block_until_ready(fwd(spectrum_vars))
        out_np = np.asarray(imgs)
        assert out_np.shape == (batch, ch, h, w), out_np.shape
        assert out_np.dtype == np.float32
        rel_err = np.linalg.norm(out_np - ref_np) / max(np.linalg.norm(ref_np), 1e-12)
        assert rel_err < 1e-4, f"{mode}: relative error too large: {rel_err}"

    print("KERNEL_OK")
</pallas_src>

<mosaic_0001>
module attributes {stable_mosaic.version = 11 : i64} {
  func.func @_irfft2_fused_kernel(%arg0: i32, %arg1: memref<8x288xf32, #tpu.memory_space<vmem>>, %arg2: memref<288x256xf32, #tpu.memory_space<vmem>>, %arg3: memref<8x256xf32, #tpu.memory_space<vmem>>) attributes {dimension_semantics = [#tpu.dimension_semantics<parallel>], iteration_bounds = array<i64: 1>, scalar_prefetch = 0 : i64, scratch_operands = 0 : i64, tpu.core_type = #tpu.core_type<tc>, window_params = [{transform_indices = @transform_0, window_bounds = array<i64: 8, 288>}, {pipeline_mode = #tpu.pipeline_mode<synchronous>, transform_indices = @transform_1, window_bounds = array<i64: 288, 256>}, {transform_indices = @transform_2, window_bounds = array<i64: 8, 256>}]} {
    %c0 = arith.constant 0 : index
    %c0_0 = arith.constant 0 : index
    %0 = vector.load %arg1[%c0, %c0_0] : memref<8x288xf32, #tpu.memory_space<vmem>>, vector<8x288xf32>
    %c0_1 = arith.constant 0 : index
    %c0_2 = arith.constant 0 : index
    %1 = vector.load %arg2[%c0_1, %c0_2] : memref<288x256xf32, #tpu.memory_space<vmem>>, vector<288x256xf32>
    %cst = arith.constant dense<0.000000e+00> : vector<8x256xf32>
    %2 = tpu.matmul %0, %1, %cst {dimension_numbers = #tpu.dot_dimension_numbers<[1], [0], [0], [1], [0, 0, 1, 1], [], []>} : vector<8x288xf32>, vector<288x256xf32>, vector<8x256xf32> -> vector<8x256xf32>
    %c0_3 = arith.constant 0 : index
    %c0_4 = arith.constant 0 : index
    %3 = vector.load %arg3[%c0_3, %c0_4] : memref<8x256xf32, #tpu.memory_space<vmem>>, vector<8x256xf32>
    tpu.vector_store %arg3[%c0_3, %c0_4], %2 {strides = array<i32>} : memref<8x256xf32, #tpu.memory_space<vmem>>, vector<8x256xf32>,
    return
  }
  func.func @transform_0(%arg0: i32) -> (i32, i32) {
    %c0_i32 = arith.constant 0 : i32
    %c0_i32_0 = arith.constant 0 : i32
    return %arg0, %c0_i32 : i32, i32
  }
  func.func @transform_1(%arg0: i32) -> (i32, i32) {
    %c0_i32 = arith.constant 0 : i32
    %c0_i32_0 = arith.constant 0 : i32
    %c0_i32_1 = arith.constant 0 : i32
    return %c0_i32, %c0_i32_0 : i32, i32
  }
  func.func @transform_2(%arg0: i32) -> (i32, i32) {
    %c0_i32 = arith.constant 0 : i32
    %c0_i32_0 = arith.constant 0 : i32
    return %arg0, %c0_i32 : i32, i32
  }
}

</mosaic_0001>

<llo_original>
// kernel: fwd.1
$region0: #{fwd.1}
  #allocation0 [shape = 'u32[]', space=smem, size = 0x4, offset = 0x4, fixed_abs, tag = 'smem constant byte address 0x4 - core index']
  #allocation1 [shape = 'u32[72,128]{1,0:T(1,128)}', space=vmem, size = 0x9000, scoped, tag = 'internal scratch']
  %s0 = inlined_call_operand.vmem [shape: f32[8,288], index: 0, kind: input, shape index: {}]
  %s1 = inlined_call_operand.vmem [shape: f32[288,256], index: 1, kind: input, shape index: {}]
  %s2 = inlined_call_operand.vmem [shape: f32[8,256], index: 2, kind: output, shape index: {}]
  %s3 = sld [smem:[#allocation0]]
  $region18: #{fwd.1} parent=0
    _
  %s5 = ssub.s32 1, %s3
  %s6 = scalar_select 0, %s5, %s3
  // Predicated region
  $region2: #{fwd.1} parent=0 // pred_check
    _
  $region3: #{fwd.1} parent=0 // pred_check_branch
    %8 = sbr.rel (0) target = $region5
  $region4: #{fwd.1} parent=0 // pred_region
    _
  $region5: #{fwd.1} parent=0 // pred_fallthru
    _
  // Predicated region
  $region6: #{fwd.1} parent=0 // pred_check
    _
  $region7: #{fwd.1} parent=0 // pred_check_branch
    %10 = sbr.rel (0) target = $region9
  $region8: #{fwd.1} parent=0 // pred_region
    _
  $region9: #{fwd.1} parent=0 // pred_fallthru
    _
  %v11 = vld [vmem:[%s0] sm:$0xff]
  %v12 = vld [vmem:[%s0 + $0x8] sm:$0xff]
  %v13 = vld [vmem:[%s0 + $0x10] sm:$0xff]
  %v14 = vld [vmem:[%s1] sm:$0xff]
  %v15 = vld [vmem:[%s1 + $0x8] sm:$0xff]
  %v16 = vld [vmem:[%s1 + $0x10] sm:$0xff]
  %v17 = vld [vmem:[%s1 + $0x18] sm:$0xff]
  %v18 = vld [vmem:[%s1 + $0x20] sm:$0xff]
  %v19 = vld [vmem:[%s1 + $0x28] sm:$0xff]
  %v20 = vld [vmem:[%s1 + $0x30] sm:$0xff]
  %v21 = vld [vmem:[%s1 + $0x38] sm:$0xff]
  %v22 = vld [vmem:[%s1 + $0x40] sm:$0xff]
  %v23 = vld [vmem:[%s1 + $0x48] sm:$0xff]
  %v24 = vld [vmem:[%s1 + $0x50] sm:$0xff]
  %v25 = vld [vmem:[%s1 + $0x58] sm:$0xff]
  %v26 = vld [vmem:[%s1 + $0x60] sm:$0xff]
  %v27 = vld [vmem:[%s1 + $0x68] sm:$0xff]
  %v28 = vld [vmem:[%s1 + $0x70] sm:$0xff]
  %v29 = vld [vmem:[%s1 + $0x78] sm:$0xff]
  %v30 = vld [vmem:[%s1 + $0x80] sm:$0xff]
  %v31 = vld [vmem:[%s1 + $0x88] sm:$0xff]
  %v32 = vld [vmem:[%s1 + $0x90] sm:$0xff]
  %v33 = vld [vmem:[%s1 + $0x98] sm:$0xff]
  %v34 = vld [vmem:[%s1 + $0xa0] sm:$0xff]
  %v35 = vld [vmem:[%s1 + $0xa8] sm:$0xff]
  %v36 = vld [vmem:[%s1 + $0xb0] sm:$0xff]
  %v37 = vld [vmem:[%s1 + $0xb8] sm:$0xff]
  %v38 = vld [vmem:[%s1 + $0xc0] sm:$0xff]
  %v39 = vld [vmem:[%s1 + $0xc8] sm:$0xff]
  %v40 = vld [vmem:[%s1 + $0xd0] sm:$0xff]
  %v41 = vld [vmem:[%s1 + $0xd8] sm:$0xff]
  %v42 = vld [vmem:[%s1 + $0xe0] sm:$0xff]
  %v43 = vld [vmem:[%s1 + $0xe8] sm:$0xff]
  %v44 = vld [vmem:[%s1 + $0xf0] sm:$0xff]
  %v45 = vld [vmem:[%s1 + $0xf8] sm:$0xff]
  %v46 = vld [vmem:[%s1 + $0x100] sm:$0xff]
  %v47 = vld [vmem:[%s1 + $0x108] sm:$0xff]
  %v48 = vld [vmem:[%s1 + $0x110] sm:$0xff]
  %v49 = vld [vmem:[%s1 + $0x118] sm:$0xff]
  %v50 = vld [vmem:[%s1 + $0x120] sm:$0xff]
  %v51 = vld [vmem:[%s1 + $0x128] sm:$0xff]
  %v52 = vld [vmem:[%s1 + $0x130] sm:$0xff]
  %v53 = vld [vmem:[%s1 + $0x138] sm:$0xff]
  %v54 = vld [vmem:[%s1 + $0x140] sm:$0xff]
  %v55 = vld [vmem:[%s1 + $0x148] sm:$0xff]
  %v56 = vld [vmem:[%s1 + $0x150] sm:$0xff]
  %v57 = vld [vmem:[%s1 + $0x158] sm:$0xff]
  %v58 = vld [vmem:[%s1 + $0x160] sm:$0xff]
  %v59 = vld [vmem:[%s1 + $0x168] sm:$0xff]
  %v60 = vld [vmem:[%s1 + $0x170] sm:$0xff]
  %v61 = vld [vmem:[%s1 + $0x178] sm:$0xff]
  %v62 = vld [vmem:[%s1 + $0x180] sm:$0xff]
  %v63 = vld [vmem:[%s1 + $0x188] sm:$0xff]
  %v64 = vld [vmem:[%s1 + $0x190] sm:$0xff]
  %v65 = vld [vmem:[%s1 + $0x198] sm:$0xff]
  %v66 = vld [vmem:[%s1 + $0x1a0] sm:$0xff]
  %v67 = vld [vmem:[%s1 + $0x1a8] sm:$0xff]
  %v68 = vld [vmem:[%s1 + $0x1b0] sm:$0xff]
  %v69 = vld [vmem:[%s1 + $0x1b8] sm:$0xff]
  %v70 = vld [vmem:[%s1 + $0x1c0] sm:$0xff]
  %v71 = vld [vmem:[%s1 + $0x1c8] sm:$0xff]
  %v72 = vld [vmem:[%s1 + $0x1d0] sm:$0xff]
  %v73 = vld [vmem:[%s1 + $0x1d8] sm:$0xff]
  %v74 = vld [vmem:[%s1 + $0x1e0] sm:$0xff]
  %v75 = vld [vmem:[%s1 + $0x1e8] sm:$0xff]
  %v76 = vld [vmem:[%s1 + $0x1f0] sm:$0xff]
  %v77 = vld [vmem:[%s1 + $0x1f8] sm:$0xff]
  %v78 = vld [vmem:[%s1 + $0x200] sm:$0xff]
  %v79 = vld [vmem:[%s1 + $0x208] sm:$0xff]
  %v80 = vld [vmem:[%s1 + $0x210] sm:$0xff]
  %v81 = vld [vmem:[%s1 + $0x218] sm:$0xff]
  %v82 = vld [vmem:[%s1 + $0x220] sm:$0xff]
  %v83 = vld [vmem:[%s1 + $0x228] sm:$0xff]
  %v84 = vld [vmem:[%s1 + $0x230] sm:$0xff]
  %v85 = vld [vmem:[%s1 + $0x238] sm:$0xff]
  %vm86 = vcmask 261120
  %v88 = vsel %vm86, %v13, 0
  %90 = vmatpush.msra.mxu0 %v44
  %91 = vmatpush.msra.mxu0 %v42
  %92 = vmatpush.msra.mxu0 %v40
  %93 = vmatpush.msra.mxu0 %v38
  %94 = vmatpush.msra.mxu0 %v36
  %95 = vmatpush.msra.mxu0 %v34
  %96 = vmatpush.msra.mxu0 %v32
  %97 = vmatpush.msra.mxu0 %v30
  %98 = vmatpush.msra.mxu0 %v28
  %99 = vmatpush.msra.mxu0 %v26
  %100 = vmatpush.msra.mxu0 %v24
  %101 = vmatpush.msra.mxu0 %v22
  %102 = vmatpush.msra.mxu0 %v20
  %103 = vmatpush.msra.mxu0 %v18
  %104 = vmatpush.msra.mxu0 %v16
  %105 = vmatpush.msra.mxu0 %v14
  %106 = vmatmul.f32.gmra.mxu0 %v11
  %v107 = vpop.f32.mrf.mxu0
  %v108 = vadd.f32 0.0, %v107
  %109 = vdwg.mxu0
  %110 = vmatpush.msra.mxu0 %v76
  %111 = vmatpush.msra.mxu0 %v74
  %112 = vmatpush.msra.mxu0 %v72
  %113 = vmatpush.msra.mxu0 %v70
  %114 = vmatpush.msra.mxu0 %v68
  %115 = vmatpush.msra.mxu0 %v66
  %116 = vmatpush.msra.mxu0 %v64
  %117 = vmatpush.msra.mxu0 %v62
  %118 = vmatpush.msra.mxu0 %v60
  %119 = vmatpush.msra.mxu0 %v58
  %120 = vmatpush.msra.mxu0 %v56
  %121 = vmatpush.msra.mxu0 %v54
  %122 = vmatpush.msra.mxu0 %v52
  %123 = vmatpush.msra.mxu0 %v50
  %124 = vmatpush.msra.mxu0 %v48
  %125 = vmatpush.msra.mxu0 %v46
  %126 = vmatmul.f32.gmra.mxu0 %v12
  %v127 = vpop.f32.mrf.mxu0
  %v128 = vadd.f32 %v108, %v127
  %129 = vdwg.mxu0
  %130 = vmatpush.msra.mxu0 0.0
  %131 = vmatpush.msra.mxu0 0.0
  %132 = vmatpush.msra.mxu0 0.0
  %133 = vmatpush.msra.mxu0 0.0
  %134 = vmatpush.msra.mxu0 0.0
  %135 = vmatpush.msra.mxu0 0.0
  %136 = vmatpush.msra.mxu0 0.0
  %137 = vmatpush.msra.mxu0 0.0
  %138 = vmatpush.msra.mxu0 0.0
  %139 = vmatpush.msra.mxu0 0.0
  %140 = vmatpush.msra.mxu0 0.0
  %141 = vmatpush.msra.mxu0 0.0
  %142 = vmatpush.msra.mxu0 %v84
  %143 = vmatpush.msra.mxu0 %v82
  %144 = vmatpush.msra.mxu0 %v80
  %145 = vmatpush.msra.mxu0 %v78
  %146 = vmatmul.f32.gmra.mxu0 %v88
  %v147 = vpop.f32.mrf.mxu0
  %v148 = vadd.f32 %v128, %v147
  %149 = vdwg.mxu0
  %150 = vmatpush.msra.mxu0 %v45
  %151 = vmatpush.msra.mxu0 %v43
  %152 = vmatpush.msra.mxu0 %v41
  %153 = vmatpush.msra.mxu0 %v39
  %154 = vmatpush.msra.mxu0 %v37
  %155 = vmatpush.msra.mxu0 %v35
  %156 = vmatpush.msra.mxu0 %v33
  %157 = vmatpush.msra.mxu0 %v31
  %158 = vmatpush.msra.mxu0 %v29
  %159 = vmatpush.msra.mxu0 %v27
  %160 = vmatpush.msra.mxu0 %v25
  %161 = vmatpush.msra.mxu0 %v23
  %162 = vmatpush.msra.mxu0 %v21
  %163 = vmatpush.msra.mxu0 %v19
  %164 = vmatpush.msra.mxu0 %v17
  %165 = vmatpush.msra.mxu0 %v15
  %166 = vmatmul.f32.gmra.mxu0 %v11
  %v167 = vpop.f32.mrf.mxu0
  %v168 = vadd.f32 0.0, %v167
  %169 = vdwg.mxu0
  %170 = vmatpush.msra.mxu0 %v77
  %171 = vmatpush.msra.mxu0 %v75
  %172 = vmatpush.msra.mxu0 %v73
  %173 = vmatpush.msra.mxu0 %v71
  %174 = vmatpush.msra.mxu0 %v69
  %175 = vmatpush.msra.mxu0 %v67
  %176 = vmatpush.msra.mxu0 %v65
  %177 = vmatpush.msra.mxu0 %v63
  %178 = vmatpush.msra.mxu0 %v61
  %179 = vmatpush.msra.mxu0 %v59
  %180 = vmatpush.msra.mxu0 %v57
  %181 = vmatpush.msra.mxu0 %v55
  %182 = vmatpush.msra.mxu0 %v53
  %183 = vmatpush.msra.mxu0 %v51
  %184 = vmatpush.msra.mxu0 %v49
  %185 = vmatpush.msra.mxu0 %v47
  %186 = vmatmul.f32.gmra.mxu0 %v12
  %v187 = vpop.f32.mrf.mxu0
  %v188 = vadd.f32 %v168, %v187
  %189 = vdwg.mxu0
  %190 = vmatpush.msra.mxu0 0.0
  %191 = vmatpush.msra.mxu0 0.0
  %192 = vmatpush.msra.mxu0 0.0
  %193 = vmatpush.msra.mxu0 0.0
  %194 = vmatpush.msra.mxu0 0.0
  %195 = vmatpush.msra.mxu0 0.0
  %196 = vmatpush.msra.mxu0 0.0
  %197 = vmatpush.msra.mxu0 0.0
  %198 = vmatpush.msra.mxu0 0.0
  %199 = vmatpush.msra.mxu0 0.0
  %200 = vmatpush.msra.mxu0 0.0
  %201 = vmatpush.msra.mxu0 0.0
  %202 = vmatpush.msra.mxu0 %v85
  %203 = vmatpush.msra.mxu0 %v83
  %204 = vmatpush.msra.mxu0 %v81
  %205 = vmatpush.msra.mxu0 %v79
  %206 = vmatmul.f32.gmra.mxu0 %v88
  %v207 = vpop.f32.mrf.mxu0
  %v208 = vadd.f32 %v188, %v207
  %209 = vdwg.mxu0
  %210 = vst [vmem:[%s2] sm:$0xff] %v148
  %211 = vst [vmem:[%s2 + $0x8] sm:$0xff] %v208
  // Predicated region
  $region10: #{fwd.1} parent=0 // pred_check
    _
  $region11: #{fwd.1} parent=0 // pred_check_branch
    %213 = sbr.rel (0) target = $region13
  $region12: #{fwd.1} parent=0 // pred_region
    _
  $region13: #{fwd.1} parent=0 // pred_fallthru
    _
  // Predicated region
  $region14: #{fwd.1} parent=0 // pred_check
    _
  $region15: #{fwd.1} parent=0 // pred_check_branch
    %215 = sbr.rel (0) target = $region17
  $region16: #{fwd.1} parent=0 // pred_region
    _
  $region17: #{fwd.1} parent=0 // pred_fallthru
    _

</llo_original>
